<compile_context>
chip_gen: v5e
topology: v5e:2x2
jax: 0.10.0
libtpu: 0.0.40
codegen_flags: <defaults>
</compile_context>

<pallas_src>
import math

import jax
import jax.numpy as jnp
from jax.experimental import pallas as pl
from jax.experimental.pallas import tpu as pltpu


def _round_up(x, m):
    return (x + m - 1) // m * m


def style_conv_kernel(patches_ref, weight_ref, style_ref, bias_ref, out_ref, wdem_ref):
    # patches_ref: (1, CKKp, tile_hw)  mm_dtype
    # weight_ref : (Cout, CKKp)        f32
    # style_ref  : (1, 1, CKKp)        f32
    # bias_ref   : (Cout, 1)           f32
    # out_ref    : (1, Cout, tile_hw)  f32
    # wdem_ref   : (Cout, CKKp)        mm_dtype VMEM scratch (per-batch resident)

    # Modulate + demodulate once per batch (HW tiles are the inner grid axis,
    # marked "arbitrary", so this runs before any other tile of this batch).
    @pl.when(pl.program_id(1) == 0)
    def _():
        w_mod = weight_ref[...] * style_ref[0]                       # [Cout, CKKp]
        inv = jax.lax.rsqrt(jnp.sum(w_mod * w_mod, axis=1, keepdims=True) + 1e-8)
        wdem_ref[...] = (w_mod * inv).astype(wdem_ref.dtype)

    # Conv as matmul; output lane dim = tile_hw (lane-dense, unmasked stores).
    acc = jnp.dot(wdem_ref[...], patches_ref[0],
                  preferred_element_type=jnp.float32)                # [Cout, tile_hw]
    out_ref[0] = acc + bias_ref[...]                                 # bias broadcast


def style_conv2d_pallas(x, w_latent, conv_w, conv_b, aff_w, aff_b, kernel_size,
                        *, mm_dtype=jnp.bfloat16, tile_hw_target=512):
    """x: [B, Cin, H, W] (NCHW, like PyTorch). Returns [B, Cout, H, W]."""
    B, Cin, H, Wd = x.shape
    assert H == Wd
    Cout = conv_w.shape[0]
    K = kernel_size
    CKK = Cin * K * K
    HW = H * Wd

    # affine: style = w @ aff_w.T + aff_b   (glue: small projection)
    style = jnp.dot(w_latent, aff_w.T) + aff_b                       # [B, Cin]

    # Same-padding for stride=1, dilation=1 (module's formula reduces to this).
    pad = (K - 1) // 2

    # im2col directly in [B, CKK, HW] layout (CKK flattened as (cin, kh, kw) to
    # match the OIHW weight flattening and the style repeat).
    # NOTE: this materializes ~K^2 x the bytes of x in HBM.
    # TODO(synk): replace host-side im2col with in-kernel K*K shifted-matmul
    # accumulation over a halo tile of x to cut HBM read traffic ~9x for 3x3.
    xp = jnp.pad(x, ((0, 0), (0, 0), (pad, pad), (pad, pad)))
    cols = [xp[:, :, kh:kh + H, kw:kw + Wd] for kh in range(K) for kw in range(K)]
    patches = jnp.stack(cols, axis=2).reshape(B, CKK, HW)            # [B, CKK, HW]

    # Pad contraction dim to a sublane multiple (8) and HW to the lane tile.
    CKKp = _round_up(CKK, 8)
    HWp = _round_up(HW, 128)
    if HWp <= tile_hw_target:
        tile_hw = HWp
    else:
        tile_hw = _round_up(tile_hw_target, 128)
        HWp = _round_up(HWp, tile_hw)
    n_hw_tiles = HWp // tile_hw

    patches = jnp.pad(patches, ((0, 0), (0, CKKp - CKK), (0, HWp - HW)))
    patches = patches.astype(mm_dtype)                               # halve HBM traffic

    weight2d = jnp.pad(conv_w.reshape(Cout, CKK), ((0, 0), (0, CKKp - CKK)))
    style_kk = jnp.pad(jnp.repeat(style, K * K, axis=1),
                       ((0, 0), (0, CKKp - CKK))).reshape(B, 1, CKKp)
    bias2d = conv_b.reshape(Cout, 1)

    out = pl.pallas_call(
        style_conv_kernel,
        out_shape=jax.ShapeDtypeStruct((B, Cout, HWp), jnp.float32),
        grid_spec=pltpu.PrefetchScalarGridSpec(
            num_scalar_prefetch=0,
            grid=(B, n_hw_tiles),
            in_specs=[
                pl.BlockSpec((1, CKKp, tile_hw), lambda b, t: (b, 0, t)),
                pl.BlockSpec((Cout, CKKp), lambda b, t: (0, 0)),     # resident
                pl.BlockSpec((1, 1, CKKp), lambda b, t: (b, 0, 0)),  # resident per b
                pl.BlockSpec((Cout, 1), lambda b, t: (0, 0)),        # resident
            ],
            out_specs=pl.BlockSpec((1, Cout, tile_hw), lambda b, t: (b, 0, t)),
            scratch_shapes=[pltpu.VMEM((Cout, CKKp), mm_dtype)],
        ),
        compiler_params=pltpu.CompilerParams(
            # HW axis must be "arbitrary": the per-batch demodulated-weight
            # scratch is filled at the first HW tile and reused by later tiles.
            dimension_semantics=("parallel", "arbitrary"),
            vmem_limit_bytes=64 * 1024 * 1024,
        ),
    )(patches, weight2d, style_kk, bias2d)

    # Output is already [B, Cout, HW]-ordered: crop HW padding, reshape to NCHW.
    return out[:, :, :HW].reshape(B, Cout, H, Wd)


def style_conv2d_reference(x, w_latent, conv_w, conv_b, aff_w, aff_b, kernel_size):
    """Pure-JAX reference mirroring the PyTorch forward (grouped conv)."""
    B, Cin, H, Wd = x.shape
    Cout = conv_w.shape[0]
    K = kernel_size
    style = jnp.dot(w_latent, aff_w.T) + aff_b                       # [B, Cin]
    weight = conv_w[None] * style[:, None, :, None, None]            # [B, Cout, Cin, K, K]
    weight = weight / jnp.sqrt(
        jnp.sum(weight ** 2, axis=(-3, -2, -1), keepdims=True) + 1e-8)
    pad = (K - 1) // 2
    out = jax.lax.conv_general_dilated(
        x.reshape(1, B * Cin, H, Wd),
        weight.reshape(B * Cout, Cin, K, K),
        window_strides=(1, 1),
        padding=[(pad, pad), (pad, pad)],
        dimension_numbers=("NCHW", "OIHW", "NCHW"),
        feature_group_count=B,
    ).reshape(B, Cout, H, Wd)
    return out + conv_b[None, :, None, None]


if __name__ == "__main__":
    # Small shapes consistent with the module's forward.
    B, Cin, H, W_sp = 2, 4, 16, 16
    Cout, K, w_dim = 8, 3, 32

    key = jax.random.PRNGKey(0)
    kx, kw, kcw, kcb, kaw, kab = jax.random.split(key, 6)

    x = jax.random.normal(kx, (B, Cin, H, W_sp), dtype=jnp.float32)
    w_latent = jax.random.normal(kw, (B, w_dim), dtype=jnp.float32)

    # Deterministic parameter init (synthetic):
    # conv weight ~ kaiming_normal(a=0.2): std = gain / sqrt(fan_in)
    gain = math.sqrt(2.0 / (1.0 + 0.2 ** 2))
    fan_in = Cin * K * K
    conv_w = jax.random.normal(kcw, (Cout, Cin, K, K), dtype=jnp.float32) * (
        gain / math.sqrt(fan_in))
    conv_b = jax.random.normal(kcb, (Cout,), dtype=jnp.float32) * 0.1
    # affine (Linear w_dim -> Cin)
    aff_w = jax.random.normal(kaw, (Cin, w_dim), dtype=jnp.float32) / math.sqrt(w_dim)
    aff_b = jax.random.normal(kab, (Cin,), dtype=jnp.float32) * 0.01

    ref = jax.block_until_ready(
        style_conv2d_reference(x, w_latent, conv_w, conv_b, aff_w, aff_b, K))

    # f32 MXU path: tight correctness check.
    out_f32 = jax.block_until_ready(
        style_conv2d_pallas(x, w_latent, conv_w, conv_b, aff_w, aff_b, K,
                            mm_dtype=jnp.float32))
    assert out_f32.shape == (B, Cout, H, W_sp)
    assert jnp.allclose(out_f32, ref, atol=1e-4, rtol=1e-4), (
        float(jnp.max(jnp.abs(out_f32 - ref))))

    # bf16 MXU path (default perf path on v6e/v7x): looser tolerance since the
    # matmul operands are quantized (accumulation & demod stay f32).
    out_bf16 = jax.block_until_ready(
        style_conv2d_pallas(x, w_latent, conv_w, conv_b, aff_w, aff_b, K))
    assert out_bf16.shape == (B, Cout, H, W_sp)
    assert jnp.allclose(out_bf16, ref, atol=5e-2, rtol=5e-2), (
        float(jnp.max(jnp.abs(out_bf16 - ref))))

    print("KERNEL_OK")
</pallas_src>

<mosaic_0001>
module attributes {stable_mosaic.version = 11 : i64} {
  func.func @style_conv_kernel(%arg0: i32, %arg1: i32, %arg2: memref<1x40x256xf32, #tpu.memory_space<vmem>>, %arg3: memref<8x40xf32, #tpu.memory_space<vmem>>, %arg4: memref<1x1x40xf32, #tpu.memory_space<vmem>>, %arg5: memref<8x1xf32, #tpu.memory_space<vmem>>, %arg6: memref<1x8x256xf32, #tpu.memory_space<vmem>>, %arg7: memref<8x40xf32, #tpu.memory_space<vmem>>) attributes {dimension_semantics = [#tpu.dimension_semantics<parallel>, #tpu.dimension_semantics<arbitrary>], iteration_bounds = array<i64: 2, 1>, scalar_prefetch = 0 : i64, scratch_operands = 1 : i64, tpu.core_type = #tpu.core_type<tc>, window_params = [{transform_indices = @transform_0, window_bounds = array<i64: 1, 40, 256>}, {pipeline_mode = #tpu.pipeline_mode<synchronous>, transform_indices = @transform_1, window_bounds = array<i64: 8, 40>}, {transform_indices = @transform_2, window_bounds = array<i64: 1, 1, 40>}, {pipeline_mode = #tpu.pipeline_mode<synchronous>, transform_indices = @transform_3, window_bounds = array<i64: 8, 1>}, {transform_indices = @transform_4, window_bounds = array<i64: 1, 8, 256>}]} {
    %c0_i32 = arith.constant 0 : i32
    %0 = arith.cmpi eq, %arg1, %c0_i32 : i32
    %1 = arith.extui %0 : i1 to i32
    %c0_i32_0 = arith.constant 0 : i32
    %2 = arith.cmpi ne, %1, %c0_i32_0 : i32
    scf.if %2 {
      %c0_10 = arith.constant 0 : index
      %c0_11 = arith.constant 0 : index
      %13 = vector.load %arg3[%c0_10, %c0_11] : memref<8x40xf32, #tpu.memory_space<vmem>>, vector<8x40xf32>
      %c0_12 = arith.constant 0 : index
      %c0_13 = arith.constant 0 : index
      %c0_14 = arith.constant 0 : index
      %14 = vector.load %arg4[%c0_12, %c0_13, %c0_14] : memref<1x1x40xf32, #tpu.memory_space<vmem>>, vector<1x1x40xf32>
      %15 = vector.shape_cast %14 : vector<1x1x40xf32> to vector<1x40xf32>
      %16 = vector.broadcast %15 : vector<1x40xf32> to vector<8x40xf32>
      %17 = arith.mulf %13, %16 : vector<8x40xf32>
      %18 = arith.mulf %17, %17 : vector<8x40xf32>
      %cst_15 = arith.constant dense<0.000000e+00> : vector<8xf32>
      %19 = vector.multi_reduction <add>, %18, %cst_15 [1] : vector<8x40xf32> to vector<8xf32>
      %20 = vector.shape_cast %19 : vector<8xf32> to vector<8x1xf32>
      %cst_16 = arith.constant 9.99999993E-9 : f32
      %21 = vector.broadcast %cst_16 : f32 to vector<8x1xf32>
      %22 = arith.addf %20, %21 : vector<8x1xf32>
      %23 = math.rsqrt %22 : vector<8x1xf32>
      %24 = vector.broadcast %23 : vector<8x1xf32> to vector<8x40xf32>
      %25 = arith.mulf %17, %24 : vector<8x40xf32>
      %c0_17 = arith.constant 0 : index
      %c0_18 = arith.constant 0 : index
      %26 = vector.load %arg7[%c0_17, %c0_18] : memref<8x40xf32, #tpu.memory_space<vmem>>, vector<8x40xf32>
      tpu.vector_store %arg7[%c0_17, %c0_18], %25 {strides = array<i32>} : memref<8x40xf32, #tpu.memory_space<vmem>>, vector<8x40xf32>,
    } else {
    }
    %c0 = arith.constant 0 : index
    %c0_1 = arith.constant 0 : index
    %3 = vector.load %arg7[%c0, %c0_1] : memref<8x40xf32, #tpu.memory_space<vmem>>, vector<8x40xf32>
    %c0_2 = arith.constant 0 : index
    %c0_3 = arith.constant 0 : index
    %c0_4 = arith.constant 0 : index
    %4 = vector.load %arg2[%c0_2, %c0_3, %c0_4] : memref<1x40x256xf32, #tpu.memory_space<vmem>>, vector<1x40x256xf32>
    %5 = vector.shape_cast %4 : vector<1x40x256xf32> to vector<40x256xf32>
    %cst = arith.constant dense<0.000000e+00> : vector<8x256xf32>
    %6 = tpu.matmul %3, %5, %cst {dimension_numbers = #tpu.dot_dimension_numbers<[1], [0], [0], [1], [0, 0, 1, 1], [], []>} : vector<8x40xf32>, vector<40x256xf32>, vector<8x256xf32> -> vector<8x256xf32>
    %c0_5 = arith.constant 0 : index
    %c0_6 = arith.constant 0 : index
    %7 = vector.load %arg5[%c0_5, %c0_6] : memref<8x1xf32, #tpu.memory_space<vmem>>, vector<8x1xf32>
    %8 = vector.broadcast %7 : vector<8x1xf32> to vector<8x256xf32>
    %9 = arith.addf %6, %8 : vector<8x256xf32>
    %c0_7 = arith.constant 0 : index
    %c0_8 = arith.constant 0 : index
    %c0_9 = arith.constant 0 : index
    %10 = vector.load %arg6[%c0_7, %c0_8, %c0_9] : memref<1x8x256xf32, #tpu.memory_space<vmem>>, vector<1x8x256xf32>
    %11 = vector.shape_cast %10 : vector<1x8x256xf32> to vector<8x256xf32>
    %12 = vector.shape_cast %9 : vector<8x256xf32> to vector<1x8x256xf32>
    tpu.vector_store %arg6[%c0_7, %c0_8, %c0_9], %12 {strides = array<i32>} : memref<1x8x256xf32, #tpu.memory_space<vmem>>, vector<1x8x256xf32>,
    return
  }
  func.func @transform_0(%arg0: i32, %arg1: i32) -> (i32, i32, i32) {
    %c0_i32 = arith.constant 0 : i32
    %c0_i32_0 = arith.constant 0 : i32
    return %arg0, %c0_i32, %arg1 : i32, i32, i32
  }
  func.func @transform_1(%arg0: i32, %arg1: i32) -> (i32, i32) {
    %c0_i32 = arith.constant 0 : i32
    %c0_i32_0 = arith.constant 0 : i32
    %c0_i32_1 = arith.constant 0 : i32
    return %c0_i32, %c0_i32_0 : i32, i32
  }
  func.func @transform_2(%arg0: i32, %arg1: i32) -> (i32, i32, i32) {
    %c0_i32 = arith.constant 0 : i32
    %c0_i32_0 = arith.constant 0 : i32
    %c0_i32_1 = arith.constant 0 : i32
    return %arg0, %c0_i32, %c0_i32_0 : i32, i32, i32
  }
  func.func @transform_3(%arg0: i32, %arg1: i32) -> (i32, i32) {
    %c0_i32 = arith.constant 0 : i32
    %c0_i32_0 = arith.constant 0 : i32
    %c0_i32_1 = arith.constant 0 : i32
    return %c0_i32, %c0_i32_0 : i32, i32
  }
  func.func @transform_4(%arg0: i32, %arg1: i32) -> (i32, i32, i32) {
    %c0_i32 = arith.constant 0 : i32
    %c0_i32_0 = arith.constant 0 : i32
    return %arg0, %c0_i32, %arg1 : i32, i32, i32
  }
}

</mosaic_0001>

<llo_original>
// kernel: tpu_custom_call.1
$region0: #{tpu_custom_call.1}
  #allocation0 [shape = 'u32[]', space=smem, size = 0x4, offset = 0x4, fixed_abs, tag = 'smem constant byte address 0x4 - core index']
  #allocation1 [shape = 'u32[72,128]{1,0:T(1,128)}', space=vmem, size = 0x9000, scoped, tag = 'internal scratch']
  #allocation2 [shape = 'f32[8,40]{1,0:T(8,128)}', space=vmem, size = 0x1000, scoped, tag = 'scratch operand']
  %s0 = inlined_call_operand.hbm [shape: f32[2,40,256], index: 0, kind: input, shape index: {}]
  %s1 = inlined_call_operand.vmem [shape: f32[8,40], index: 1, kind: input, shape index: {}]
  %s2 = inlined_call_operand.hbm [shape: f32[2,1,40], index: 2, kind: input, shape index: {}]
  %s3 = inlined_call_operand.vmem [shape: f32[8,1], index: 3, kind: input, shape index: {}]
  %s4 = inlined_call_operand.hbm [shape: f32[2,8,256], index: 4, kind: output, shape index: {}]
  %s5 = sld [smem:[#allocation0]]
  $region61: #{tpu_custom_call.1} parent=0
    _
  %s7 = ssub.s32 1, %s5
  %s8 = scalar_select 0, %s7, %s5
  $region1: #{tpu_custom_call.1} parent=0
    #allocation3 [shape = 'u8[81920]{0}', space=vmem, size = 0x14000, scoped, tag = 'input window, operand 0']
    #allocation4 [shape = 's32[2]{0}', space=sflag, size = 0x8, scoped, tag = 'scoped memory for tpu_custom_call.1']
    #allocation5 [shape = 's32[2]{0}', space=sflag, size = 0x8, scoped, tag = 'scoped memory for tpu_custom_call.1']
    #allocation6 [shape = 'u8[1024]{0}', space=vmem, size = 0x400, scoped, tag = 'input window, operand 2']
    #allocation7 [shape = 's32[2]{0}', space=sflag, size = 0x8, scoped, tag = 'scoped memory for tpu_custom_call.1']
    #allocation8 [shape = 'u8[16384]{0}', space=vmem, size = 0x4000, scoped, tag = 'output window, operand 0']
    %9 = vsyncpa [#allocation4], 0
    %s10 = scalar_lea.sflag [#allocation4], 1
    %11 = vsyncpa %s10, 0
    %12 = vsyncpa [#allocation7], 0
    %s13 = scalar_lea.sflag [#allocation7], 1
    %14 = vsyncpa %s13, 0
    %15 = vsyncpa [#allocation5], 0
    %s16 = scalar_lea.sflag [#allocation5], 1
    %17 = vsyncpa %s16, 0
    loop: start=0, step=1, limit=4
    $region2: #{tpu_custom_call.1} parent=1 // loop_pre_header
      _
    $region3: #{tpu_custom_call.1} parent=1 // loop_header
      %s19 = sphi 0, %s23
      %p20 = scmp.ge.s32.totalorder %s19, 4
      %s26 = sphi 0, %s38
      %s27 = sphi 0, %s34
      %s28 = sphi 0, %s26
      %s29 = sphi 0, %s27
      %s30 = sphi 0, %s28
      %s31 = sphi 0, %s29
      %s43 = sphi 0, %s45
      %s46 = sphi 0, %s43
      %s47 = sphi 0, %s46
      %s63 = sphi 0, %s47
      %s67 = sphi 0, %s67
      %s69 = sphi 0, %s67
      %s70 = sphi 0, %s69
      %s84 = sphi 0, %s70
      %s90 = sphi 0, %s92
      %s93 = sphi 0, %s90
      %s94 = sphi 0, %s93
      %s110 = sphi 0, %s94
      %s114 = sphi 0, %s114
      %s116 = sphi 0, %s114
      %s117 = sphi 0, %s116
      %s131 = sphi 0, %s117
      %s139 = sphi 0, %s141
      %s142 = sphi 0, %s139
      %s143 = sphi 0, %s142
      %s159 = sphi 0, %s143
    $region4: #{tpu_custom_call.1} parent=1 // loop_header_branch
      %22 = sbr.rel (%p20) target = $region8
    $region5: #{tpu_custom_call.1} parent=1 // loop_body
      %s24 = ssub.s32 %s19, 1
      %s25 = ssub.s32 %s19, 2
      %s32 = sadd.s32 1, %s27
      %p33 = scmp.ge.s32.totalorder %s32, 1
      %s34 = scalar_select %p33, 0, %s32
      %s35 = sadd.s32 1, %s26
      %s36 = scalar_select %p33, %s35, %s26
      %p37 = scmp.ge.s32.totalorder %s36, 2
      %s38 = scalar_select %p37, 0, %s36
      %s39 = ssub.s32 %s26, %s38
      %s40 = ssub.s32 %s27, %s34
      %s41 = sor.u32 %s39, %s40
      %p42 = scmp.eq.s32.totalorder %s41, 0
      %s44 = sadd.s32 %s43, 1
      %s45 = scalar_select %p42, %s43, %s44
      %p48 = pneg %p42
      %p49 = scmp.eq.s32.totalorder %s19, 1
      %p50 = por %p48, %p49
      %p51 = scmp.ne.s32.totalorder %s43, %s46
      %p52 = scmp.eq.s32.totalorder %s19, 0
      %p53 = por %p51, %p52
      %p54 = scmp.ne.s32.totalorder %s43, %s46
      %p55 = scmp.eq.s32.totalorder %s24, 1
      %p56 = por %p54, %p55
      %p57 = scmp.ne.s32.totalorder %s46, %s47
      %p58 = scmp.eq.s32.totalorder %s24, 0
      %p59 = por %p57, %p58
      %p60 = scmp.ne.s32.totalorder %s46, %s47
      %p61 = scmp.eq.s32.totalorder %s25, 1
      %p62 = por %p60, %p61
      %p64 = scmp.ne.s32.totalorder %s47, %s63
      %p65 = scmp.eq.s32.totalorder %s25, 0
      %p66 = por %p64, %p65
      %s68 = sadd.s32 %s67, 1
      %p71 = scmp.eq.s32.totalorder %s19, 1
      %p72 = scmp.ne.s32.totalorder %s67, %s69
      %p73 = scmp.eq.s32.totalorder %s19, 0
      %p74 = por %p72, %p73
      %p75 = scmp.ne.s32.totalorder %s67, %s69
      %p76 = scmp.eq.s32.totalorder %s24, 1
      %p77 = por %p75, %p76
      %p78 = scmp.ne.s32.totalorder %s69, %s70
      %p79 = scmp.eq.s32.totalorder %s24, 0
      %p80 = por %p78, %p79
      %p81 = scmp.ne.s32.totalorder %s69, %s70
      %p82 = scmp.eq.s32.totalorder %s25, 1
      %p83 = por %p81, %p82
      %p85 = scmp.ne.s32.totalorder %s70, %s84
      %p86 = scmp.eq.s32.totalorder %s25, 0
      %p87 = por %p85, %p86
      %s88 = ssub.s32 %s26, %s38
      %p89 = scmp.eq.s32.totalorder %s88, 0
      %s91 = sadd.s32 %s90, 1
      %s92 = scalar_select %p89, %s90, %s91
      %p95 = pneg %p89
      %p96 = scmp.eq.s32.totalorder %s19, 1
      %p97 = por %p95, %p96
      %p98 = scmp.ne.s32.totalorder %s90, %s93
      %p99 = scmp.eq.s32.totalorder %s19, 0
      %p100 = por %p98, %p99
      %p101 = scmp.ne.s32.totalorder %s90, %s93
      %p102 = scmp.eq.s32.totalorder %s24, 1
      %p103 = por %p101, %p102
      %p104 = scmp.ne.s32.totalorder %s93, %s94
      %p105 = scmp.eq.s32.totalorder %s24, 0
      %p106 = por %p104, %p105
      %p107 = scmp.ne.s32.totalorder %s93, %s94
      %p108 = scmp.eq.s32.totalorder %s25, 1
      %p109 = por %p107, %p108
      %p111 = scmp.ne.s32.totalorder %s94, %s110
      %p112 = scmp.eq.s32.totalorder %s25, 0
      %p113 = por %p111, %p112
      %s115 = sadd.s32 %s114, 1
      %p118 = scmp.eq.s32.totalorder %s19, 1
      %p119 = scmp.ne.s32.totalorder %s114, %s116
      %p120 = scmp.eq.s32.totalorder %s19, 0
      %p121 = por %p119, %p120
      %p122 = scmp.ne.s32.totalorder %s114, %s116
      %p123 = scmp.eq.s32.totalorder %s24, 1
      %p124 = por %p122, %p123
      %p125 = scmp.ne.s32.totalorder %s116, %s117
      %p126 = scmp.eq.s32.totalorder %s24, 0
      %p127 = por %p125, %p126
      %p128 = scmp.ne.s32.totalorder %s116, %s117
      %p129 = scmp.eq.s32.totalorder %s25, 1
      %p130 = por %p128, %p129
      %p132 = scmp.ne.s32.totalorder %s117, %s131
      %p133 = scmp.eq.s32.totalorder %s25, 0
      %p134 = por %p132, %p133
      %s135 = ssub.s32 %s26, %s38
      %s136 = ssub.s32 %s27, %s34
      %s137 = sor.u32 %s135, %s136
      %p138 = scmp.eq.s32.totalorder %s137, 0
      %s140 = sadd.s32 %s139, 1
      %s141 = scalar_select %p138, %s139, %s140
      %p144 = pneg %p138
      %p145 = scmp.eq.s32.totalorder %s19, 1
      %p146 = por %p144, %p145
      %p147 = scmp.ne.s32.totalorder %s139, %s142
      %p148 = scmp.eq.s32.totalorder %s19, 0
      %p149 = por %p147, %p148
      %p150 = scmp.ne.s32.totalorder %s139, %s142
      %p151 = scmp.eq.s32.totalorder %s24, 1
      %p152 = por %p150, %p151
      %p153 = scmp.ne.s32.totalorder %s142, %s143
      %p154 = scmp.eq.s32.totalorder %s24, 0
      %p155 = por %p153, %p154
      %p156 = scmp.ne.s32.totalorder %s142, %s143
      %p157 = scmp.eq.s32.totalorder %s25, 1
      %p158 = por %p156, %p157
      %p160 = scmp.ne.s32.totalorder %s143, %s159
      %p161 = scmp.eq.s32.totalorder %s25, 0
      %p162 = por %p160, %p161
      %p163 = scmp.le.s32.totalorder 1, %s19
      %p164 = scmp.lt.s32.totalorder %s19, 3
      %p165 = pnand %p163, %p164
      %p166 = pneg %p165
      // Predicated region
      $region9: #{tpu_custom_call.1} parent=5 // pred_check
        _
      $region10: #{tpu_custom_call.1} parent=5 // pred_check_branch
        %168 = sbr.rel (%p165) target = $region12
      $region11: #{tpu_custom_call.1} parent=5 // pred_region
        %s169 = ssub.s32 %s19, 1
        // Predicated region
        $region13: #{tpu_custom_call.1} parent=11 // pred_check
          %p170 = pneg %p80
        $region14: #{tpu_custom_call.1} parent=11 // pred_check_branch
          %172 = sbr.rel (%p170) target = $region16
        $region15: #{tpu_custom_call.1} parent=11 // pred_region
          _
        $region16: #{tpu_custom_call.1} parent=11 // pred_fallthru
          _
        // Predicated region
        $region17: #{tpu_custom_call.1} parent=11 // pred_check
          %p173 = pneg %p127
        $region18: #{tpu_custom_call.1} parent=11 // pred_check_branch
          %175 = sbr.rel (%p173) target = $region20
        $region19: #{tpu_custom_call.1} parent=11 // pred_region
          _
        $region20: #{tpu_custom_call.1} parent=11 // pred_fallthru
          _
      $region12: #{tpu_custom_call.1} parent=5 // pred_fallthru
        _
      %p176 = scmp.lt.s32.totalorder %s19, 2
      // Predicated region
      $region21: #{tpu_custom_call.1} parent=5 // pred_check
        %p177 = pneg %p176
      $region22: #{tpu_custom_call.1} parent=5 // pred_check_branch
        %179 = sbr.rel (%p177) target = $region24
      $region23: #{tpu_custom_call.1} parent=5 // pred_region
        // Predicated region
        $region25: #{tpu_custom_call.1} parent=23 // pred_check
          %p180 = pneg %p53
        $region26: #{tpu_custom_call.1} parent=23 // pred_check_branch
          %182 = sbr.rel (%p180) target = $region28
        $region27: #{tpu_custom_call.1} parent=23 // pred_region
          %s183 = sand.u32 %s43, 1
          %s184 = scalar_lea.sflag [#allocation4], %s183
          %s185 = sand.u32 %s43, 1
          %s186 = smul.addr %s185, 80
          %s187 = scalar_lea.vmem [#allocation3], %s186
          %s188 = smul.u32 2, %s27
          %190 = vsyncadd %s184, 0
          %s191 = smul.addr %s26, 10
          %s192 = sadd.s32 %s188, %s191
          %s193 = smul.addr %s192, 8
          %s194 = scalar_lea.hbm %s0, %s193
          %s195 = sshll.u32 %s194, 4
          %s196 = int_to_ptr.hbm [resolvable:$true] %s195
          %s197 = sshll.u32 %s187, 4
          %s198 = int_to_ptr.vmem [resolvable:$true] %s197
          %203 = dma.hbm_to_vmem [thread:$0]  %s196, 1280, %s198, %s184, 256, 256, 16
        $region28: #{tpu_custom_call.1} parent=23 // pred_fallthru
          _
        // Predicated region
        $region29: #{tpu_custom_call.1} parent=23 // pred_check
          %p204 = pneg %p100
        $region30: #{tpu_custom_call.1} parent=23 // pred_check_branch
          %206 = sbr.rel (%p204) target = $region32
        $region31: #{tpu_custom_call.1} parent=23 // pred_region
          %s207 = sand.u32 %s90, 1
          %s208 = scalar_lea.sflag [#allocation7], %s207
          %s209 = sand.u32 %s90, 1
          %s210 = scalar_lea.vmem [#allocation6], %s209
          %212 = vsyncadd %s208, 0
          %s213 = scalar_lea.hbm %s2, %s26
          %s215 = sshll.u32 %s213, 4
          %s216 = int_to_ptr.hbm [resolvable:$true] %s215
          %s217 = sshll.u32 %s210, 4
          %s218 = int_to_ptr.vmem [resolvable:$true] %s217
          %220 = dma.hbm_to_vmem [thread:$0]  %s216, 16, %s218, %s208
        $region32: #{tpu_custom_call.1} parent=23 // pred_fallthru
          _
      $region24: #{tpu_custom_call.1} parent=5 // pred_fallthru
        _
      %p221 = scmp.le.s32.totalorder 1, %s19
      %p222 = scmp.lt.s32.totalorder %s19, 3
      %p223 = pnand %p221, %p222
      %p224 = pneg %p223
      // Predicated region
      $region33: #{tpu_custom_call.1} parent=5 // pred_check
        _
      $region34: #{tpu_custom_call.1} parent=5 // pred_check_branch
        %226 = sbr.rel (%p223) target = $region36
      $region35: #{tpu_custom_call.1} parent=5 // pred_region
        %s227 = ssub.s32 %s19, 1
        %s228 = sand.u32 %s46, 1
        %s229 = scalar_lea.sflag [#allocation4], %s228
        %s230 = sand.u32 %s46, 1
        %s231 = smul.addr %s230, 80
        %s232 = scalar_lea.vmem [#allocation3], %s231
        // Predicated region
        $region37: #{tpu_custom_call.1} parent=35 // pred_check
          %p233 = pneg %p59
        $region38: #{tpu_custom_call.1} parent=35 // pred_check_branch
          %235 = sbr.rel (%p233) target = $region40
        $region39: #{tpu_custom_call.1} parent=35 // pred_region
          %237 = dma.done %s229, 1280
        $region40: #{tpu_custom_call.1} parent=35 // pred_fallthru
          _
        %s238 = sand.u32 %s93, 1
        %s239 = scalar_lea.sflag [#allocation7], %s238
        %s240 = sand.u32 %s93, 1
        %s241 = scalar_lea.vmem [#allocation6], %s240
        // Predicated region
        $region41: #{tpu_custom_call.1} parent=35 // pred_check
          %p242 = pneg %p106
        $region42: #{tpu_custom_call.1} parent=35 // pred_check_branch
          %244 = sbr.rel (%p242) target = $region44
        $region43: #{tpu_custom_call.1} parent=35 // pred_region
          %246 = dma.done %s239, 16
        $region44: #{tpu_custom_call.1} parent=35 // pred_fallthru
          _
        %s247 = sand.u32 %s46, 1
        %s248 = scalar_lea.sflag [#allocation4], %s247
        %s249 = sand.u32 %s46, 1
        %s250 = smul.addr %s249, 80
        %s251 = scalar_lea.vmem [#allocation3], %s250
        %p252 = pneg %p59
        %p253 = pneg %p56
        %p254 = pneg %p80
        %p255 = pneg %p77
        %s256 = sand.u32 %s93, 1
        %s257 = scalar_lea.sflag [#allocation7], %s256
        %s258 = sand.u32 %s93, 1
        %s259 = scalar_lea.vmem [#allocation6], %s258
        %p260 = pneg %p106
        %p261 = pneg %p103
        %p262 = pneg %p127
        %p263 = pneg %p124
        %p264 = pneg %p155
        %p265 = pneg %p152
        %s266 = sand.u32 %s142, 1
        %s267 = scalar_lea.sflag [#allocation5], %s266
        %s268 = sand.u32 %s142, 1
        %s269 = smul.addr %s268, 16
        %s270 = scalar_lea.vmem [#allocation8], %s269
        %s271 = smul.u32 2, %s29
        %s272 = smul.u32 2, %s29
        %p273 = scmp.eq.s32.totalorder %s29, 0
        // Predicated region
        $region45: #{tpu_custom_call.1} parent=35 // pred_check
          %p274 = pneg %p273
        $region46: #{tpu_custom_call.1} parent=35 // pred_check_branch
          %276 = sbr.rel (%p274) target = $region48
        $region47: #{tpu_custom_call.1} parent=35 // pred_region
          %v277 = vld [vmem:[%s1] sm:$0xff]
          %v278 = vld [vmem:[%s241] sm:$0x1]
          %v280 = vperm.slane %v278, 0
          %v282 = vmul.f32 %v277, %v280
          %v283 = vmul.f32 %v282, %v282
          %vm284 = vcmask 326656
          %v285 = vsel %vm284, %v283, 0.0
          %286 = vadd.xlane.f32.xlu0 %v285
          %v287 = vpop.xlane.xlu0 %286
          %v288 = vadd.f32 %v287, 1e-08
          %v289 = vrsqrt.pop %v288
          %v290 = vmul.f32 %v289, %v288
          %v291 = vmul.f32 %v290, %v289
          %v292 = vmul.f32 0.5, %v291
          %v293 = vsub.f32 1.5, %v292
          %v294 = vmul.f32 %v289, %v293
          %vm295 = vweird.f32 %v288
          %vm296 = vweird.f32 %v289
          %vm297 = vmor %vm295, %vm296
          %v298 = vsel %vm297, %v289, %v294
          %v299 = vmul.f32 %v282, %v298
          %300 = vst.msk [vmem:[#allocation2] sm:$0xff] %vm284, %v299
        $region48: #{tpu_custom_call.1} parent=35 // pred_fallthru
          _
        %v301 = vld [vmem:[#allocation2] sm:$0xff]
        %v302 = vld [vmem:[%s232] sm:$0xff]
        %v303 = vld [vmem:[%s232 + $0x8] sm:$0xff]
        %v304 = vld [vmem:[%s232 + $0x10] sm:$0xff]
        %v305 = vld [vmem:[%s232 + $0x18] sm:$0xff]
        %v306 = vld [vmem:[%s232 + $0x20] sm:$0xff]
        %v307 = vld [vmem:[%s232 + $0x28] sm:$0xff]
        %v308 = vld [vmem:[%s232 + $0x30] sm:$0xff]
        %v309 = vld [vmem:[%s232 + $0x38] sm:$0xff]
        %v310 = vld [vmem:[%s232 + $0x40] sm:$0xff]
        %v311 = vld [vmem:[%s232 + $0x48] sm:$0xff]
        %v312 = vld [vmem:[%s3] sm:$0xff]
        %314 = vset.pattern.permute.xlu0 0
        %315 = vperm.xlu0 %314, %v312
        %v316 = vpop.permute.xlu0 %315
        %vm318 = vcmask 326656
        %v320 = vsel %vm318, %v301, 0
        %322 = vmatpush.msra.mxu0 0.0
        %323 = vmatpush.msra.mxu0 0.0
        %324 = vmatpush.msra.mxu0 0.0
        %325 = vmatpush.msra.mxu0 0.0
        %326 = vmatpush.msra.mxu0 0.0
        %327 = vmatpush.msra.mxu0 0.0
        %328 = vmatpush.msra.mxu0 0.0
        %329 = vmatpush.msra.mxu0 0.0
        %330 = vmatpush.msra.mxu0 0.0
        %331 = vmatpush.msra.mxu0 0.0
        %332 = vmatpush.msra.mxu0 0.0
        %333 = vmatpush.msra.mxu0 %v310
        %334 = vmatpush.msra.mxu0 %v308
        %335 = vmatpush.msra.mxu0 %v306
        %336 = vmatpush.msra.mxu0 %v304
        %337 = vmatpush.msra.mxu0 %v302
        %338 = vmatmul.f32.gmra.mxu0 %v320
        %v339 = vpop.f32.mrf.mxu0
        %v340 = vadd.f32 %v316, %v339
        %341 = vdwg.mxu0
        %342 = vmatpush.msra.mxu0 0.0
        %343 = vmatpush.msra.mxu0 0.0
        %344 = vmatpush.msra.mxu0 0.0
        %345 = vmatpush.msra.mxu0 0.0
        %346 = vmatpush.msra.mxu0 0.0
        %347 = vmatpush.msra.mxu0 0.0
        %348 = vmatpush.msra.mxu0 0.0
        %349 = vmatpush.msra.mxu0 0.0
        %350 = vmatpush.msra.mxu0 0.0
        %351 = vmatpush.msra.mxu0 0.0
        %352 = vmatpush.msra.mxu0 0.0
        %353 = vmatpush.msra.mxu0 %v311
        %354 = vmatpush.msra.mxu0 %v309
        %355 = vmatpush.msra.mxu0 %v307
        %356 = vmatpush.msra.mxu0 %v305
        %357 = vmatpush.msra.mxu0 %v303
        %358 = vmatmul.f32.gmra.mxu0 %v320
        %v359 = vpop.f32.mrf.mxu0
        %v360 = vadd.f32 %v316, %v359
        %361 = vdwg.mxu0
        %362 = vst [vmem:[%s270] sm:$0xff] %v340
        %363 = vst [vmem:[%s270 + $0x8] sm:$0xff] %v360
        %s364 = sand.u32 %s142, 1
        %s365 = scalar_lea.sflag [#allocation5], %s364
        %s366 = sand.u32 %s142, 1
        %s367 = smul.addr %s366, 16
        %s368 = scalar_lea.vmem [#allocation8], %s367
        // Predicated region
        $region49: #{tpu_custom_call.1} parent=35 // pred_check
          %p369 = pneg %p152
        $region50: #{tpu_custom_call.1} parent=35 // pred_check_branch
          %371 = sbr.rel (%p369) target = $region52
        $region51: #{tpu_custom_call.1} parent=35 // pred_region
          %s372 = smul.u32 2, %s29
          %374 = vsyncadd %s365, 0
          %s375 = smul.addr %s28, 2
          %s376 = sadd.s32 %s372, %s375
          %s377 = smul.addr %s376, 8
          %s378 = scalar_lea.hbm %s4, %s377
          %s380 = sshll.u32 %s368, 4
          %s381 = int_to_ptr.vmem [resolvable:$true] %s380
          %s382 = sshll.u32 %s378, 4
          %s383 = int_to_ptr.hbm [resolvable:$true] %s382
          %385 = dma.vmem_to_hbm [thread:$0]  %s381, 256, %s383, %s365
        $region52: #{tpu_custom_call.1} parent=35 // pred_fallthru
          _
      $region36: #{tpu_custom_call.1} parent=5 // pred_fallthru
        _
      %p386 = scmp.le.s32.totalorder 2, %s19
      // Predicated region
      $region53: #{tpu_custom_call.1} parent=5 // pred_check
        %p387 = pneg %p386
      $region54: #{tpu_custom_call.1} parent=5 // pred_check_branch
        %389 = sbr.rel (%p387) target = $region56
      $region55: #{tpu_custom_call.1} parent=5 // pred_region
        %s390 = ssub.s32 %s19, 2
        // Predicated region
        $region57: #{tpu_custom_call.1} parent=55 // pred_check
          %p391 = pneg %p158
        $region58: #{tpu_custom_call.1} parent=55 // pred_check_branch
          %393 = sbr.rel (%p391) target = $region60
        $region59: #{tpu_custom_call.1} parent=55 // pred_region
          %s394 = sand.u32 %s143, 1
          %s395 = scalar_lea.sflag [#allocation5], %s394
          %s396 = sand.u32 %s143, 1
          %s397 = smul.addr %s396, 16
          %s398 = scalar_lea.vmem [#allocation8], %s397
          %400 = dma.done %s395, 256
        $region60: #{tpu_custom_call.1} parent=55 // pred_fallthru
          _
      $region56: #{tpu_custom_call.1} parent=5 // pred_fallthru
        _
    $region6: #{tpu_custom_call.1} parent=1 // loop_footer
      %s23 = sadd.s32 1, %s19
    $region7: #{tpu_custom_call.1} parent=1 // loop_footer_branch
      %18 = sbr.rel target = $region3
    $region8: #{tpu_custom_call.1} parent=1 // loop_exit
      _
    %401 = vsyncpa [#allocation4], 1
    %s402 = scalar_lea.sflag [#allocation4], 1
    %403 = vsyncpa %s402, 1
    %404 = vsyncpa [#allocation7], 1
    %s405 = scalar_lea.sflag [#allocation7], 1
    %406 = vsyncpa %s405, 1
    %407 = vsyncpa [#allocation5], 1
    %s408 = scalar_lea.sflag [#allocation5], 1
    %409 = vsyncpa %s408, 1

</llo_original>
